<compile_context>
chip_gen: v5e
topology: v5e:2x2
jax: 0.10.0
libtpu: 0.0.40
codegen_flags: <defaults>
</compile_context>

<pallas_src>
import functools

import jax
import jax.numpy as jnp
from jax.experimental import pallas as pl
from jax.experimental.pallas import tpu as pltpu


def _round_up(x: int, m: int) -> int:
    return (x + m - 1) // m * m


def gin_kernel(a_ref, xw0_ref, xw0_self_ref, b0_ref, w1_ref, b1_ref,
               o_ref, acc_ref, *, eps: float):
    k = pl.program_id(1)

    @pl.when(k == 0)
    def _():
        acc_ref[...] = jnp.zeros_like(acc_ref)

    a = a_ref[...]
    if a.dtype != jnp.bfloat16:          # int8-in-HBM path (v5e/v6e option)
        a = a.astype(jnp.bfloat16)
    # Sum aggregation in the W0 basis:  acc += A_tile @ (X@W0)_tile
    acc_ref[...] += jnp.dot(a, xw0_ref[...], preferred_element_type=jnp.float32)

    @pl.when(k == pl.num_programs(1) - 1)
    def _():
        # Epilogue: exact (1+eps) self term + b0, ReLU, second linear, store.
        h = (acc_ref[...]
             + (1.0 + eps) * xw0_self_ref[...].astype(jnp.float32)
             + b0_ref[...])
        z = jnp.maximum(h, 0.0).astype(jnp.bfloat16)
        out = jnp.dot(z, w1_ref[...], preferred_element_type=jnp.float32) + b1_ref[...]
        o_ref[...] = out.astype(o_ref.dtype)


def gin_conv_pallas(x, edge_index, w0, b0, w1, b1, eps: float = 0.0,
                    *, tile_m: int = 1024, tile_k: int = 4096,
                    adj_dtype=jnp.bfloat16):
    """x: [N, Cin]; edge_index: [2, E] (src=row 0, dst=row 1);
    w0: [Cin, H], b0: [H], w1: [H, Cout], b1: [Cout] (weights stored [in, out])."""
    n, _ = x.shape
    hid = w0.shape[1]
    cout = w1.shape[1]

    # Lane-dense channel padding (zero rows/cols -> no effect on the result).
    hid_p = _round_up(hid, 128)
    cout_p = _round_up(cout, 128)

    # Row / K tiling.  Prefer >= 2 row tiles so the "parallel" row axis can be
    # sharded across both TensorCores on v7x (neutral on single-TC v5e/v6e).
    tm = min(tile_m, _round_up(n, 128))
    if _round_up(n, tm) // tm < 2 and tm > 128:
        tm = max(128, _round_up(tm // 2, 128))
    tk = min(tile_k, _round_up(n, 128))
    nr = _round_up(n, tm)
    nc = _round_up(n, tk)
    n_pad = max(nr, nc)

    # Dense adjacency built directly in the HBM storage dtype at padded shape
    # (single N^2 pass):  adj[dst, src] = edge multiplicity.
    src, dst = edge_index[0], edge_index[1]
    adj = jnp.zeros((nr, nc), dtype=adj_dtype).at[dst, src].add(
        jnp.ones(src.shape, dtype=adj_dtype))

    # XW0 precompute (tiny matmul) + lane-dense padding; streamed instead of X.
    xw0 = jnp.pad(x.astype(jnp.float32) @ w0.astype(jnp.float32),
                  ((0, n_pad - n), (0, hid_p - hid))).astype(jnp.bfloat16)
    w1_p = jnp.pad(w1.astype(jnp.float32),
                   ((0, hid_p - hid), (0, cout_p - cout))).astype(jnp.bfloat16)
    b0_p = jnp.pad(b0.reshape(1, -1).astype(jnp.float32),
                   ((0, 0), (0, hid_p - hid)))
    b1_p = jnp.pad(b1.reshape(1, -1).astype(jnp.float32),
                   ((0, 0), (0, cout_p - cout)))

    grid = (nr // tm, nc // tk)

    abytes = jnp.dtype(adj_dtype).itemsize
    # Explicit VMEM budget: double-buffered A / XW0 / out + accumulator +
    # resident weights.  Capped at 56 MiB (fits v7x's 64 MiB physical); always
    # raises the v5e 16 MiB scoped default.
    vmem_need = (2 * tm * tk * abytes          # A double buffer
                 + 2 * tk * hid_p * 2          # XW0 (k-stream)
                 + 2 * tm * hid_p * 2          # XW0 self rows (i-stream)
                 + 2 * tm * cout_p * 4         # out double buffer
                 + tm * hid_p * 4              # f32 accumulator
                 + 2 * (hid_p * cout_p * 2 + hid_p * 4 + cout_p * 4))
    vmem_limit = min(max(int(vmem_need * 1.5) + (4 << 20), 32 << 20), 56 << 20)

    cost = pl.CostEstimate(
        flops=2 * nr * nc * hid_p + 2 * nr * hid_p * cout_p,
        transcendentals=0,
        bytes_accessed=(nr * nc * abytes                    # A streamed once
                        + (nr // tm) * nc * hid_p * 2       # XW0 per row tile
                        + nr * hid_p * 2                    # self rows
                        + nr * cout_p * 4                   # output
                        + hid_p * cout_p * 2 + (hid_p + cout_p) * 4),
    )

    out_p = pl.pallas_call(
        functools.partial(gin_kernel, eps=float(eps)),
        out_shape=jax.ShapeDtypeStruct((nr, cout_p), jnp.float32),
        grid_spec=pltpu.PrefetchScalarGridSpec(
            num_scalar_prefetch=0,
            grid=grid,
            in_specs=[
                pl.BlockSpec((tm, tk), lambda i, k: (i, k)),         # A tile
                pl.BlockSpec((tk, hid_p), lambda i, k: (k, 0)),      # XW0 (k-stream)
                pl.BlockSpec((tm, hid_p), lambda i, k: (i, 0)),      # XW0 self rows
                pl.BlockSpec((1, hid_p), lambda i, k: (0, 0)),       # b0 (resident)
                pl.BlockSpec((hid_p, cout_p), lambda i, k: (0, 0)),  # W1 (resident)
                pl.BlockSpec((1, cout_p), lambda i, k: (0, 0)),      # b1 (resident)
            ],
            out_specs=pl.BlockSpec((tm, cout_p), lambda i, k: (i, 0)),
            scratch_shapes=[pltpu.VMEM((tm, hid_p), jnp.float32)],
        ),
        compiler_params=pltpu.CompilerParams(
            dimension_semantics=("parallel", "arbitrary"),
            vmem_limit_bytes=vmem_limit),
        cost_estimate=cost,
    )(adj, xw0, xw0, b0_p, w1_p, b1_p)

    return out_p[:n, :cout]


def reference_f32(x, edge_index, w0, b0, w1, b1, eps=0.0):
    """Pure-f32 GINConv reference (true module semantics)."""
    agg = jnp.zeros_like(x).at[edge_index[1]].add(x[edge_index[0]])
    h = (1.0 + eps) * x + agg
    z = jnp.maximum(h @ w0 + b0[None, :], 0.0)
    return z @ w1 + b1[None, :]


def reference_mirrored(x, edge_index, w0, b0, w1, b1, eps=0.0):
    """Reference mirroring the kernel's bf16-storage / f32-accumulate numerics."""
    def bf(a):
        return a.astype(jnp.bfloat16).astype(jnp.float32)

    n = x.shape[0]
    adj = jnp.zeros((n, n), jnp.float32).at[edge_index[1], edge_index[0]].add(1.0)
    xw0 = bf(x @ w0)
    h = adj @ xw0 + (1.0 + eps) * xw0 + b0[None, :]
    z = bf(jnp.maximum(h, 0.0))
    return z @ bf(w1) + b1[None, :]


if __name__ == "__main__":
    # Small shapes consistent with the module; N not a multiple of 128 to
    # exercise padding, and small enough that tiles clamp (2 row tiles x 1 k tile).
    N = 200
    in_channels = 8
    out_channels = 16
    hidden_dim = out_channels   # GIN_MLP(hidden_dim=None) -> hidden = out_dim
    eps = 0.0

    key = jax.random.PRNGKey(0)
    kx, k0w, k0b, k1w, k1b = jax.random.split(key, 5)

    # Node features [N, Cin]
    x = jax.random.normal(kx, (N, in_channels), dtype=jnp.float32)

    # Deterministic ring graph (both directions), edge_index shape [2, E]
    src = jnp.concatenate([jnp.arange(N), (jnp.arange(N) + 1) % N])
    dst = jnp.concatenate([(jnp.arange(N) + 1) % N, jnp.arange(N)])
    edge_index = jnp.stack([src, dst]).astype(jnp.int32)  # [2, E]

    # PyTorch-style Linear init (uniform +-1/sqrt(fan_in)), stored [in, out].
    bound0 = 1.0 / jnp.sqrt(jnp.float32(in_channels))
    w0 = jax.random.uniform(k0w, (in_channels, hidden_dim), jnp.float32,
                            -bound0, bound0)
    b0 = jax.random.uniform(k0b, (hidden_dim,), jnp.float32, -bound0, bound0)
    bound1 = 1.0 / jnp.sqrt(jnp.float32(hidden_dim))
    w1 = jax.random.uniform(k1w, (hidden_dim, out_channels), jnp.float32,
                            -bound1, bound1)
    b1 = jax.random.uniform(k1b, (out_channels,), jnp.float32, -bound1, bound1)

    out = gin_conv_pallas(x, edge_index, w0, b0, w1, b1, eps=eps)
    out = jax.block_until_ready(out)
    assert out.shape == (N, out_channels)

    # Tight check vs. a reference that mirrors the kernel's quantization.
    ref_q = reference_mirrored(x, edge_index, w0, b0, w1, b1, eps=eps)
    err_q = jnp.max(jnp.abs(out - ref_q))
    assert jnp.allclose(out, ref_q, atol=1e-2, rtol=1e-2), \
        f"mismatch vs mirrored ref, max err {err_q}"

    # Loose fidelity check vs. the true f32 GINConv semantics (guards against
    # semantic bugs without being sensitive to expected bf16 drift).
    ref_f = reference_f32(x, edge_index, w0, b0, w1, b1, eps=eps)
    err_f = jnp.max(jnp.abs(out - ref_f))
    assert jnp.allclose(out, ref_f, atol=3e-1, rtol=1e-1), \
        f"drift vs f32 ref, max err {err_f}"

    print("KERNEL_OK")
</pallas_src>

<mosaic_0001>
module attributes {stable_mosaic.version = 11 : i64} {
  func.func @gin_kernel(%arg0: i32, %arg1: i32, %arg2: memref<128x256xbf16, #tpu.memory_space<vmem>>, %arg3: memref<256x128xbf16, #tpu.memory_space<vmem>>, %arg4: memref<128x128xbf16, #tpu.memory_space<vmem>>, %arg5: memref<1x128xf32, #tpu.memory_space<vmem>>, %arg6: memref<128x128xbf16, #tpu.memory_space<vmem>>, %arg7: memref<1x128xf32, #tpu.memory_space<vmem>>, %arg8: memref<128x128xf32, #tpu.memory_space<vmem>>, %arg9: memref<128x128xf32, #tpu.memory_space<vmem>>) attributes {dimension_semantics = [#tpu.dimension_semantics<parallel>, #tpu.dimension_semantics<arbitrary>], iteration_bounds = array<i64: 2, 1>, scalar_prefetch = 0 : i64, scratch_operands = 1 : i64, tpu.core_type = #tpu.core_type<tc>, window_params = [{transform_indices = @transform_0, window_bounds = array<i64: 128, 256>}, {transform_indices = @transform_1, window_bounds = array<i64: 256, 128>}, {transform_indices = @transform_2, window_bounds = array<i64: 128, 128>}, {pipeline_mode = #tpu.pipeline_mode<synchronous>, transform_indices = @transform_3, window_bounds = array<i64: 1, 128>}, {pipeline_mode = #tpu.pipeline_mode<synchronous>, transform_indices = @transform_4, window_bounds = array<i64: 128, 128>}, {pipeline_mode = #tpu.pipeline_mode<synchronous>, transform_indices = @transform_5, window_bounds = array<i64: 1, 128>}, {transform_indices = @transform_6, window_bounds = array<i64: 128, 128>}]} {
    %c0_i32 = arith.constant 0 : i32
    %0 = arith.cmpi eq, %arg1, %c0_i32 : i32
    %1 = arith.extui %0 : i1 to i32
    %c0_i32_0 = arith.constant 0 : i32
    %2 = arith.cmpi ne, %1, %c0_i32_0 : i32
    scf.if %2 {
      %cst_10 = arith.constant 0.000000e+00 : f32
      %12 = vector.broadcast %cst_10 : f32 to vector<128x128xf32>
      %c0_11 = arith.constant 0 : index
      %c0_12 = arith.constant 0 : index
      %13 = vector.load %arg9[%c0_11, %c0_12] : memref<128x128xf32, #tpu.memory_space<vmem>>, vector<128x128xf32>
      tpu.vector_store %arg9[%c0_11, %c0_12], %12 {strides = array<i32>} : memref<128x128xf32, #tpu.memory_space<vmem>>, vector<128x128xf32>,
    } else {
    }
    %c0 = arith.constant 0 : index
    %c0_1 = arith.constant 0 : index
    %3 = vector.load %arg2[%c0, %c0_1] : memref<128x256xbf16, #tpu.memory_space<vmem>>, vector<128x256xbf16>
    %c0_2 = arith.constant 0 : index
    %c0_3 = arith.constant 0 : index
    %4 = vector.load %arg9[%c0_2, %c0_3] : memref<128x128xf32, #tpu.memory_space<vmem>>, vector<128x128xf32>
    %c0_4 = arith.constant 0 : index
    %c0_5 = arith.constant 0 : index
    %5 = vector.load %arg3[%c0_4, %c0_5] : memref<256x128xbf16, #tpu.memory_space<vmem>>, vector<256x128xbf16>
    %cst = arith.constant dense<0.000000e+00> : vector<128x128xf32>
    %6 = tpu.matmul %3, %5, %cst {dimension_numbers = #tpu.dot_dimension_numbers<[1], [0], [0], [1], [0, 0, 1, 1], [], []>} : vector<128x256xbf16>, vector<256x128xbf16>, vector<128x128xf32> -> vector<128x128xf32>
    %7 = arith.addf %4, %6 : vector<128x128xf32>
    %c0_6 = arith.constant 0 : index
    %c0_7 = arith.constant 0 : index
    %8 = vector.load %arg9[%c0_6, %c0_7] : memref<128x128xf32, #tpu.memory_space<vmem>>, vector<128x128xf32>
    tpu.vector_store %arg9[%c0_6, %c0_7], %7 {strides = array<i32>} : memref<128x128xf32, #tpu.memory_space<vmem>>, vector<128x128xf32>,
    %c0_i32_8 = arith.constant 0 : i32
    %9 = arith.cmpi eq, %arg1, %c0_i32_8 : i32
    %10 = arith.extui %9 : i1 to i32
    %c0_i32_9 = arith.constant 0 : i32
    %11 = arith.cmpi ne, %10, %c0_i32_9 : i32
    scf.if %11 {
      %c0_10 = arith.constant 0 : index
      %c0_11 = arith.constant 0 : index
      %12 = vector.load %arg9[%c0_10, %c0_11] : memref<128x128xf32, #tpu.memory_space<vmem>>, vector<128x128xf32>
      %c0_12 = arith.constant 0 : index
      %c0_13 = arith.constant 0 : index
      %13 = vector.load %arg4[%c0_12, %c0_13] : memref<128x128xbf16, #tpu.memory_space<vmem>>, vector<128x128xbf16>
      %14 = arith.extf %13 : vector<128x128xbf16> to vector<128x128xf32>
      %cst_14 = arith.constant 1.000000e+00 : f32
      %15 = vector.broadcast %cst_14 : f32 to vector<128x128xf32>
      %16 = arith.mulf %15, %14 : vector<128x128xf32>
      %17 = arith.addf %12, %16 : vector<128x128xf32>
      %c0_15 = arith.constant 0 : index
      %c0_16 = arith.constant 0 : index
      %18 = vector.load %arg5[%c0_15, %c0_16] : memref<1x128xf32, #tpu.memory_space<vmem>>, vector<1x128xf32>
      %19 = vector.broadcast %18 : vector<1x128xf32> to vector<128x128xf32>
      %20 = arith.addf %17, %19 : vector<128x128xf32>
      %cst_17 = arith.constant 0.000000e+00 : f32
      %21 = vector.broadcast %cst_17 : f32 to vector<128x128xf32>
      %22 = arith.maximumf %20, %21 : vector<128x128xf32>
      %23 = arith.truncf %22 : vector<128x128xf32> to vector<128x128xbf16>
      %c0_18 = arith.constant 0 : index
      %c0_19 = arith.constant 0 : index
      %24 = vector.load %arg6[%c0_18, %c0_19] : memref<128x128xbf16, #tpu.memory_space<vmem>>, vector<128x128xbf16>
      %cst_20 = arith.constant dense<0.000000e+00> : vector<128x128xf32>
      %25 = tpu.matmul %23, %24, %cst_20 {dimension_numbers = #tpu.dot_dimension_numbers<[1], [0], [0], [1], [0, 0, 1, 1], [], []>} : vector<128x128xbf16>, vector<128x128xbf16>, vector<128x128xf32> -> vector<128x128xf32>
      %c0_21 = arith.constant 0 : index
      %c0_22 = arith.constant 0 : index
      %26 = vector.load %arg7[%c0_21, %c0_22] : memref<1x128xf32, #tpu.memory_space<vmem>>, vector<1x128xf32>
      %27 = vector.broadcast %26 : vector<1x128xf32> to vector<128x128xf32>
      %28 = arith.addf %25, %27 : vector<128x128xf32>
      %c0_23 = arith.constant 0 : index
      %c0_24 = arith.constant 0 : index
      %29 = vector.load %arg8[%c0_23, %c0_24] : memref<128x128xf32, #tpu.memory_space<vmem>>, vector<128x128xf32>
      tpu.vector_store %arg8[%c0_23, %c0_24], %28 {strides = array<i32>} : memref<128x128xf32, #tpu.memory_space<vmem>>, vector<128x128xf32>,
    } else {
    }
    return
  }
  func.func @transform_0(%arg0: i32, %arg1: i32) -> (i32, i32) {
    %c0_i32 = arith.constant 0 : i32
    return %arg0, %arg1 : i32, i32
  }
  func.func @transform_1(%arg0: i32, %arg1: i32) -> (i32, i32) {
    %c0_i32 = arith.constant 0 : i32
    %c0_i32_0 = arith.constant 0 : i32
    return %arg1, %c0_i32 : i32, i32
  }
  func.func @transform_2(%arg0: i32, %arg1: i32) -> (i32, i32) {
    %c0_i32 = arith.constant 0 : i32
    %c0_i32_0 = arith.constant 0 : i32
    return %arg0, %c0_i32 : i32, i32
  }
  func.func @transform_3(%arg0: i32, %arg1: i32) -> (i32, i32) {
    %c0_i32 = arith.constant 0 : i32
    %c0_i32_0 = arith.constant 0 : i32
    %c0_i32_1 = arith.constant 0 : i32
    return %c0_i32, %c0_i32_0 : i32, i32
  }
  func.func @transform_4(%arg0: i32, %arg1: i32) -> (i32, i32) {
    %c0_i32 = arith.constant 0 : i32
    %c0_i32_0 = arith.constant 0 : i32
    %c0_i32_1 = arith.constant 0 : i32
    return %c0_i32, %c0_i32_0 : i32, i32
  }
  func.func @transform_5(%arg0: i32, %arg1: i32) -> (i32, i32) {
    %c0_i32 = arith.constant 0 : i32
    %c0_i32_0 = arith.constant 0 : i32
    %c0_i32_1 = arith.constant 0 : i32
    return %c0_i32, %c0_i32_0 : i32, i32
  }
  func.func @transform_6(%arg0: i32, %arg1: i32) -> (i32, i32) {
    %c0_i32 = arith.constant 0 : i32
    %c0_i32_0 = arith.constant 0 : i32
    return %arg0, %c0_i32 : i32, i32
  }
}

</mosaic_0001>

<llo_original>
// kernel: tpu_custom_call.1
$region0: #{tpu_custom_call.1}
  #allocation0 [shape = 'u32[]', space=smem, size = 0x4, offset = 0x4, fixed_abs, tag = 'smem constant byte address 0x4 - core index']
  #allocation1 [shape = 'u32[72,128]{1,0:T(1,128)}', space=vmem, size = 0x9000, scoped, tag = 'internal scratch']
  #allocation2 [shape = 'f32[128,128]{1,0:T(8,128)}', space=vmem, size = 0x10000, scoped, tag = 'scratch operand']
  %s0 = inlined_call_operand.hbm [shape: bf16[256,256], index: 0, kind: input, shape index: {}]
  %s1 = inlined_call_operand.hbm [shape: bf16[256,128], index: 1, kind: input, shape index: {}]
  %s2 = inlined_call_operand.hbm [shape: bf16[256,128], index: 2, kind: input, shape index: {}]
  %s3 = inlined_call_operand.vmem [shape: f32[1,128], index: 3, kind: input, shape index: {}]
  %s4 = inlined_call_operand.hbm [shape: bf16[128,128], index: 4, kind: input, shape index: {}]
  %s5 = inlined_call_operand.vmem [shape: f32[1,128], index: 5, kind: input, shape index: {}]
  %s6 = inlined_call_operand.hbm [shape: f32[256,128], index: 6, kind: output, shape index: {}]
  %s7 = sld [smem:[#allocation0]]
  $region81: #{tpu_custom_call.1} parent=0
    _
  %s9 = ssub.s32 1, %s7
  %s10 = scalar_select 0, %s9, %s7
  $region1: #{tpu_custom_call.1} parent=0
    #allocation3 [shape = 'u8[131072]{0}', space=vmem, size = 0x20000, scoped, tag = 'input window, operand 0']
    #allocation4 [shape = 's32[2]{0}', space=sflag, size = 0x8, scoped, tag = 'scoped memory for tpu_custom_call.1']
    #allocation5 [shape = 's32[2]{0}', space=sflag, size = 0x8, scoped, tag = 'scoped memory for tpu_custom_call.1']
    #allocation6 [shape = 'u8[65536]{0}', space=vmem, size = 0x10000, scoped, tag = 'input window, operand 1, single buffered']
    #allocation7 [shape = 's32[1]{0}', space=sflag, size = 0x4, scoped, tag = 'scoped memory for tpu_custom_call.1']
    #allocation8 [shape = 'u8[65536]{0}', space=vmem, size = 0x10000, scoped, tag = 'input window, operand 2']
    #allocation9 [shape = 'u8[32768]{0}', space=vmem, size = 0x8000, scoped, tag = 'input window, operand 4, single buffered']
    #allocation10 [shape = 'u8[131072]{0}', space=vmem, size = 0x20000, scoped, tag = 'output window, operand 0']
    %11 = vsyncpa [#allocation4], 0
    %s12 = scalar_lea.sflag [#allocation4], 1
    %13 = vsyncpa %s12, 0
    %14 = vsyncpa [#allocation7], 0
    %15 = vsyncpa [#allocation5], 0
    %s16 = scalar_lea.sflag [#allocation5], 1
    %17 = vsyncpa %s16, 0
    loop: start=0, step=1, limit=4
    $region2: #{tpu_custom_call.1} parent=1 // loop_pre_header
      _
    $region3: #{tpu_custom_call.1} parent=1 // loop_header
      %s19 = sphi 0, %s23
      %p20 = scmp.ge.s32.totalorder %s19, 4
      %s26 = sphi 0, %s38
      %s27 = sphi 0, %s34
      %s28 = sphi 0, %s26
      %s29 = sphi 0, %s27
      %s30 = sphi 0, %s28
      %s31 = sphi 0, %s29
      %s43 = sphi 0, %s45
      %s46 = sphi 0, %s43
      %s47 = sphi 0, %s46
      %s63 = sphi 0, %s47
      %s69 = sphi 0, %s71
      %s72 = sphi 0, %s69
      %s73 = sphi 0, %s72
      %s89 = sphi 0, %s73
      %s95 = sphi 0, %s97
      %s98 = sphi 0, %s95
      %s99 = sphi 0, %s98
      %s115 = sphi 0, %s99
      %s119 = sphi 0, %s119
      %s121 = sphi 0, %s119
      %s122 = sphi 0, %s121
      %s136 = sphi 0, %s122
      %s140 = sphi 0, %s140
      %s142 = sphi 0, %s140
      %s143 = sphi 0, %s142
      %s157 = sphi 0, %s143
      %s161 = sphi 0, %s161
      %s163 = sphi 0, %s161
      %s164 = sphi 0, %s163
      %s178 = sphi 0, %s164
      %s184 = sphi 0, %s186
      %s187 = sphi 0, %s184
      %s188 = sphi 0, %s187
      %s204 = sphi 0, %s188
    $region4: #{tpu_custom_call.1} parent=1 // loop_header_branch
      %22 = sbr.rel (%p20) target = $region8
    $region5: #{tpu_custom_call.1} parent=1 // loop_body
      %s24 = ssub.s32 %s19, 1
      %s25 = ssub.s32 %s19, 2
      %s32 = sadd.s32 1, %s27
      %p33 = scmp.ge.s32.totalorder %s32, 1
      %s34 = scalar_select %p33, 0, %s32
      %s35 = sadd.s32 1, %s26
      %s36 = scalar_select %p33, %s35, %s26
      %p37 = scmp.ge.s32.totalorder %s36, 2
      %s38 = scalar_select %p37, 0, %s36
      %s39 = ssub.s32 %s26, %s38
      %s40 = ssub.s32 %s27, %s34
      %s41 = sor.u32 %s39, %s40
      %p42 = scmp.eq.s32.totalorder %s41, 0
      %s44 = sadd.s32 %s43, 1
      %s45 = scalar_select %p42, %s43, %s44
      %p48 = pneg %p42
      %p49 = scmp.eq.s32.totalorder %s19, 1
      %p50 = por %p48, %p49
      %p51 = scmp.ne.s32.totalorder %s43, %s46
      %p52 = scmp.eq.s32.totalorder %s19, 0
      %p53 = por %p51, %p52
      %p54 = scmp.ne.s32.totalorder %s43, %s46
      %p55 = scmp.eq.s32.totalorder %s24, 1
      %p56 = por %p54, %p55
      %p57 = scmp.ne.s32.totalorder %s46, %s47
      %p58 = scmp.eq.s32.totalorder %s24, 0
      %p59 = por %p57, %p58
      %p60 = scmp.ne.s32.totalorder %s46, %s47
      %p61 = scmp.eq.s32.totalorder %s25, 1
      %p62 = por %p60, %p61
      %p64 = scmp.ne.s32.totalorder %s47, %s63
      %p65 = scmp.eq.s32.totalorder %s25, 0
      %p66 = por %p64, %p65
      %s67 = ssub.s32 %s27, %s34
      %p68 = scmp.eq.s32.totalorder %s67, 0
      %s70 = sadd.s32 %s69, 1
      %s71 = scalar_select %p68, %s69, %s70
      %p74 = pneg %p68
      %p75 = scmp.eq.s32.totalorder %s19, 1
      %p76 = por %p74, %p75
      %p77 = scmp.ne.s32.totalorder %s69, %s72
      %p78 = scmp.eq.s32.totalorder %s19, 0
      %p79 = por %p77, %p78
      %p80 = scmp.ne.s32.totalorder %s69, %s72
      %p81 = scmp.eq.s32.totalorder %s24, 1
      %p82 = por %p80, %p81
      %p83 = scmp.ne.s32.totalorder %s72, %s73
      %p84 = scmp.eq.s32.totalorder %s24, 0
      %p85 = por %p83, %p84
      %p86 = scmp.ne.s32.totalorder %s72, %s73
      %p87 = scmp.eq.s32.totalorder %s25, 1
      %p88 = por %p86, %p87
      %p90 = scmp.ne.s32.totalorder %s73, %s89
      %p91 = scmp.eq.s32.totalorder %s25, 0
      %p92 = por %p90, %p91
      %s93 = ssub.s32 %s26, %s38
      %p94 = scmp.eq.s32.totalorder %s93, 0
      %s96 = sadd.s32 %s95, 1
      %s97 = scalar_select %p94, %s95, %s96
      %p100 = pneg %p94
      %p101 = scmp.eq.s32.totalorder %s19, 1
      %p102 = por %p100, %p101
      %p103 = scmp.ne.s32.totalorder %s95, %s98
      %p104 = scmp.eq.s32.totalorder %s19, 0
      %p105 = por %p103, %p104
      %p106 = scmp.ne.s32.totalorder %s95, %s98
      %p107 = scmp.eq.s32.totalorder %s24, 1
      %p108 = por %p106, %p107
      %p109 = scmp.ne.s32.totalorder %s98, %s99
      %p110 = scmp.eq.s32.totalorder %s24, 0
      %p111 = por %p109, %p110
      %p112 = scmp.ne.s32.totalorder %s98, %s99
      %p113 = scmp.eq.s32.totalorder %s25, 1
      %p114 = por %p112, %p113
      %p116 = scmp.ne.s32.totalorder %s99, %s115
      %p117 = scmp.eq.s32.totalorder %s25, 0
      %p118 = por %p116, %p117
      %s120 = sadd.s32 %s119, 1
      %p123 = scmp.eq.s32.totalorder %s19, 1
      %p124 = scmp.ne.s32.totalorder %s119, %s121
      %p125 = scmp.eq.s32.totalorder %s19, 0
      %p126 = por %p124, %p125
      %p127 = scmp.ne.s32.totalorder %s119, %s121
      %p128 = scmp.eq.s32.totalorder %s24, 1
      %p129 = por %p127, %p128
      %p130 = scmp.ne.s32.totalorder %s121, %s122
      %p131 = scmp.eq.s32.totalorder %s24, 0
      %p132 = por %p130, %p131
      %p133 = scmp.ne.s32.totalorder %s121, %s122
      %p134 = scmp.eq.s32.totalorder %s25, 1
      %p135 = por %p133, %p134
      %p137 = scmp.ne.s32.totalorder %s122, %s136
      %p138 = scmp.eq.s32.totalorder %s25, 0
      %p139 = por %p137, %p138
      %s141 = sadd.s32 %s140, 1
      %p144 = scmp.eq.s32.totalorder %s19, 1
      %p145 = scmp.ne.s32.totalorder %s140, %s142
      %p146 = scmp.eq.s32.totalorder %s19, 0
      %p147 = por %p145, %p146
      %p148 = scmp.ne.s32.totalorder %s140, %s142
      %p149 = scmp.eq.s32.totalorder %s24, 1
      %p150 = por %p148, %p149
      %p151 = scmp.ne.s32.totalorder %s142, %s143
      %p152 = scmp.eq.s32.totalorder %s24, 0
      %p153 = por %p151, %p152
      %p154 = scmp.ne.s32.totalorder %s142, %s143
      %p155 = scmp.eq.s32.totalorder %s25, 1
      %p156 = por %p154, %p155
      %p158 = scmp.ne.s32.totalorder %s143, %s157
      %p159 = scmp.eq.s32.totalorder %s25, 0
      %p160 = por %p158, %p159
      %s162 = sadd.s32 %s161, 1
      %p165 = scmp.eq.s32.totalorder %s19, 1
      %p166 = scmp.ne.s32.totalorder %s161, %s163
      %p167 = scmp.eq.s32.totalorder %s19, 0
      %p168 = por %p166, %p167
      %p169 = scmp.ne.s32.totalorder %s161, %s163
      %p170 = scmp.eq.s32.totalorder %s24, 1
      %p171 = por %p169, %p170
      %p172 = scmp.ne.s32.totalorder %s163, %s164
      %p173 = scmp.eq.s32.totalorder %s24, 0
      %p174 = por %p172, %p173
      %p175 = scmp.ne.s32.totalorder %s163, %s164
      %p176 = scmp.eq.s32.totalorder %s25, 1
      %p177 = por %p175, %p176
      %p179 = scmp.ne.s32.totalorder %s164, %s178
      %p180 = scmp.eq.s32.totalorder %s25, 0
      %p181 = por %p179, %p180
      %s182 = ssub.s32 %s26, %s38
      %p183 = scmp.eq.s32.totalorder %s182, 0
      %s185 = sadd.s32 %s184, 1
      %s186 = scalar_select %p183, %s184, %s185
      %p189 = pneg %p183
      %p190 = scmp.eq.s32.totalorder %s19, 1
      %p191 = por %p189, %p190
      %p192 = scmp.ne.s32.totalorder %s184, %s187
      %p193 = scmp.eq.s32.totalorder %s19, 0
      %p194 = por %p192, %p193
      %p195 = scmp.ne.s32.totalorder %s184, %s187
      %p196 = scmp.eq.s32.totalorder %s24, 1
      %p197 = por %p195, %p196
      %p198 = scmp.ne.s32.totalorder %s187, %s188
      %p199 = scmp.eq.s32.totalorder %s24, 0
      %p200 = por %p198, %p199
      %p201 = scmp.ne.s32.totalorder %s187, %s188
      %p202 = scmp.eq.s32.totalorder %s25, 1
      %p203 = por %p201, %p202
      %p205 = scmp.ne.s32.totalorder %s188, %s204
      %p206 = scmp.eq.s32.totalorder %s25, 0
      %p207 = por %p205, %p206
      %p208 = scmp.le.s32.totalorder 1, %s19
      %p209 = scmp.lt.s32.totalorder %s19, 3
      %p210 = pnand %p208, %p209
      %p211 = pneg %p210
      // Predicated region
      $region9: #{tpu_custom_call.1} parent=5 // pred_check
        _
      $region10: #{tpu_custom_call.1} parent=5 // pred_check_branch
        %213 = sbr.rel (%p210) target = $region12
      $region11: #{tpu_custom_call.1} parent=5 // pred_region
        %s214 = ssub.s32 %s19, 1
        // Predicated region
        $region13: #{tpu_custom_call.1} parent=11 // pred_check
          %p215 = pneg %p85
        $region14: #{tpu_custom_call.1} parent=11 // pred_check_branch
          %217 = sbr.rel (%p215) target = $region16
        $region15: #{tpu_custom_call.1} parent=11 // pred_region
          %s218 = smul.u32 32, %s29
          %220 = vsyncadd [#allocation7], 0
          %s221 = smul.addr %s218, 4
          %s222 = scalar_lea.hbm %s1, %s221
          %s223 = sshll.u32 %s222, 4
          %s224 = int_to_ptr.hbm [resolvable:$true] %s223
          %s225 = sshll.u32 [#allocation6], 4
          %s226 = int_to_ptr.vmem [resolvable:$true] %s225
          %231 = dma.hbm_to_vmem [thread:$0]  %s224, 2048, %s226, [#allocation7], 64, 64, 4
        $region16: #{tpu_custom_call.1} parent=11 // pred_fallthru
          _
        // Predicated region
        $region17: #{tpu_custom_call.1} parent=11 // pred_check
          %p232 = pneg %p132
        $region18: #{tpu_custom_call.1} parent=11 // pred_check_branch
          %234 = sbr.rel (%p232) target = $region20
        $region19: #{tpu_custom_call.1} parent=11 // pred_region
          _
        $region20: #{tpu_custom_call.1} parent=11 // pred_fallthru
          _
        // Predicated region
        $region21: #{tpu_custom_call.1} parent=11 // pred_check
          %p235 = pneg %p153
        $region22: #{tpu_custom_call.1} parent=11 // pred_check_branch
          %237 = sbr.rel (%p235) target = $region24
        $region23: #{tpu_custom_call.1} parent=11 // pred_region
          %239 = vsyncadd [#allocation7], 0
          %s240 = sshll.u32 %s4, 4
          %s241 = int_to_ptr.hbm [resolvable:$true] %s240
          %s242 = sshll.u32 [#allocation9], 4
          %s243 = int_to_ptr.vmem [resolvable:$true] %s242
          %248 = dma.hbm_to_vmem [thread:$0]  %s241, 1024, %s243, [#allocation7], 64, 64, 4
        $region24: #{tpu_custom_call.1} parent=11 // pred_fallthru
          _
        // Predicated region
        $region25: #{tpu_custom_call.1} parent=11 // pred_check
          %p249 = pneg %p174
        $region26: #{tpu_custom_call.1} parent=11 // pred_check_branch
          %251 = sbr.rel (%p249) target = $region28
        $region27: #{tpu_custom_call.1} parent=11 // pred_region
          _
        $region28: #{tpu_custom_call.1} parent=11 // pred_fallthru
          _
      $region12: #{tpu_custom_call.1} parent=5 // pred_fallthru
        _
      %p252 = scmp.lt.s32.totalorder %s19, 2
      // Predicated region
      $region29: #{tpu_custom_call.1} parent=5 // pred_check
        %p253 = pneg %p252
      $region30: #{tpu_custom_call.1} parent=5 // pred_check_branch
        %255 = sbr.rel (%p253) target = $region32
      $region31: #{tpu_custom_call.1} parent=5 // pred_region
        // Predicated region
        $region33: #{tpu_custom_call.1} parent=31 // pred_check
          %p256 = pneg %p53
        $region34: #{tpu_custom_call.1} parent=31 // pred_check_branch
          %258 = sbr.rel (%p256) target = $region36
        $region35: #{tpu_custom_call.1} parent=31 // pred_region
          %s259 = sand.u32 %s19, 1
          %s260 = scalar_lea.sflag [#allocation4], %s259
          %s261 = sand.u32 %s43, 1
          %s262 = smul.addr %s261, 128
          %s263 = scalar_lea.vmem [#allocation3], %s262
          %s264 = smul.u32 16, %s26
          %s265 = smul.u32 2, %s27
          %267 = vsyncadd %s260, 0
          %s268 = smul.addr %s264, 2
          %s269 = sadd.s32 %s265, %s268
          %s270 = smul.addr %s269, 4
          %s271 = scalar_lea.hbm %s0, %s270
          %s272 = sshll.u32 %s271, 4
          %s273 = int_to_ptr.hbm [resolvable:$true] %s272
          %s274 = sshll.u32 %s263, 4
          %s275 = int_to_ptr.vmem [resolvable:$true] %s274
          %280 = dma.hbm_to_vmem [thread:$0]  %s273, 2048, %s275, %s260, 128, 128, 8
        $region36: #{tpu_custom_call.1} parent=31 // pred_fallthru
          _
        // Predicated region
        $region37: #{tpu_custom_call.1} parent=31 // pred_check
          %p281 = pneg %p105
        $region38: #{tpu_custom_call.1} parent=31 // pred_check_branch
          %283 = sbr.rel (%p281) target = $region40
        $region39: #{tpu_custom_call.1} parent=31 // pred_region
          %s284 = sand.u32 %s19, 1
          %s285 = scalar_lea.sflag [#allocation4], %s284
          %s286 = sand.u32 %s95, 1
          %s287 = smul.addr %s286, 64
          %s288 = scalar_lea.vmem [#allocation8], %s287
          %s289 = smul.u32 16, %s26
          %291 = vsyncadd %s285, 0
          %s292 = smul.addr %s289, 4
          %s293 = scalar_lea.hbm %s2, %s292
          %s294 = sshll.u32 %s293, 4
          %s295 = int_to_ptr.hbm [resolvable:$true] %s294
          %s296 = sshll.u32 %s288, 4
          %s297 = int_to_ptr.vmem [resolvable:$true] %s296
          %302 = dma.hbm_to_vmem [thread:$0]  %s295, 1024, %s297, %s285, 64, 64, 4
        $region40: #{tpu_custom_call.1} parent=31 // pred_fallthru
          _
      $region32: #{tpu_custom_call.1} parent=5 // pred_fallthru
        _
      %p303 = scmp.le.s32.totalorder 1, %s19
      %p304 = scmp.lt.s32.totalorder %s19, 3
      %p305 = pnand %p303, %p304
      %p306 = pneg %p305
      // Predicated region
      $region41: #{tpu_custom_call.1} parent=5 // pred_check
        _
      $region42: #{tpu_custom_call.1} parent=5 // pred_check_branch
        %308 = sbr.rel (%p305) target = $region44
      $region43: #{tpu_custom_call.1} parent=5 // pred_region
        %s309 = ssub.s32 %s19, 1
        %s310 = sand.u32 %s24, 1
        %s311 = scalar_lea.sflag [#allocation4], %s310
        %s312 = sand.u32 %s46, 1
        %s313 = smul.addr %s312, 128
        %s314 = scalar_lea.vmem [#allocation3], %s313
        // Predicated region
        $region45: #{tpu_custom_call.1} parent=43 // pred_check
          %p315 = pneg %p59
        $region46: #{tpu_custom_call.1} parent=43 // pred_check_branch
          %317 = sbr.rel (%p315) target = $region48
        $region47: #{tpu_custom_call.1} parent=43 // pred_region
          %319 = dma.done %s311, 2048
        $region48: #{tpu_custom_call.1} parent=43 // pred_fallthru
          _
        // Predicated region
        $region49: #{tpu_custom_call.1} parent=43 // pred_check
          %p320 = pneg %p85
        $region50: #{tpu_custom_call.1} parent=43 // pred_check_branch
          %322 = sbr.rel (%p320) target = $region52
        $region51: #{tpu_custom_call.1} parent=43 // pred_region
          %324 = dma.done [#allocation7], 2048
        $region52: #{tpu_custom_call.1} parent=43 // pred_fallthru
          _
        %s325 = sand.u32 %s24, 1
        %s326 = scalar_lea.sflag [#allocation4], %s325
        %s327 = sand.u32 %s98, 1
        %s328 = smul.addr %s327, 64
        %s329 = scalar_lea.vmem [#allocation8], %s328
        // Predicated region
        $region53: #{tpu_custom_call.1} parent=43 // pred_check
          %p330 = pneg %p111
        $region54: #{tpu_custom_call.1} parent=43 // pred_check_branch
          %332 = sbr.rel (%p330) target = $region56
        $region55: #{tpu_custom_call.1} parent=43 // pred_region
          %334 = dma.done %s326, 1024
        $region56: #{tpu_custom_call.1} parent=43 // pred_fallthru
          _
        // Predicated region
        $region57: #{tpu_custom_call.1} parent=43 // pred_check
          %p335 = pneg %p153
        $region58: #{tpu_custom_call.1} parent=43 // pred_check_branch
          %337 = sbr.rel (%p335) target = $region60
        $region59: #{tpu_custom_call.1} parent=43 // pred_region
          %339 = dma.done [#allocation7], 1024
        $region60: #{tpu_custom_call.1} parent=43 // pred_fallthru
          _
        %s340 = sand.u32 %s24, 1
        %s341 = scalar_lea.sflag [#allocation4], %s340
        %s342 = sand.u32 %s46, 1
        %s343 = smul.addr %s342, 128
        %s344 = scalar_lea.vmem [#allocation3], %s343
        %p345 = pneg %p59
        %p346 = pneg %p56
        %p347 = pneg %p85
        %p348 = pneg %p82
        %s349 = sand.u32 %s24, 1
        %s350 = scalar_lea.sflag [#allocation4], %s349
        %s351 = sand.u32 %s98, 1
        %s352 = smul.addr %s351, 64
        %s353 = scalar_lea.vmem [#allocation8], %s352
        %p354 = pneg %p111
        %p355 = pneg %p108
        %p356 = pneg %p132
        %p357 = pneg %p129
        %p358 = pneg %p153
        %p359 = pneg %p150
        %p360 = pneg %p174
        %p361 = pneg %p171
        %p362 = pneg %p200
        %p363 = pneg %p197
        %s364 = sand.u32 %s187, 1
        %s365 = scalar_lea.sflag [#allocation5], %s364
        %s366 = sand.u32 %s187, 1
        %s367 = smul.addr %s366, 128
        %s368 = scalar_lea.vmem [#allocation10], %s367
        %s369 = smul.u32 16, %s28
        %s370 = smul.u32 2, %s29
        %s371 = smul.u32 32, %s29
        %s372 = smul.u32 16, %s28
        %s373 = smul.u32 16, %s28
        %p374 = scmp.eq.s32.totalorder %s29, 0
        // Predicated region
        $region61: #{tpu_custom_call.1} parent=43 // pred_check
          %p375 = pneg %p374
        $region62: #{tpu_custom_call.1} parent=43 // pred_check_branch
          %377 = sbr.rel (%p375) target = $region64
        $region63: #{tpu_custom_call.1} parent=43 // pred_region
          %378 = vst [vmem:[#allocation2] sm:$0xff] 0.0
          %379 = vst [vmem:[#allocation2 + $0x8] sm:$0xff] 0.0
          %380 = vst [vmem:[#allocation2 + $0x10] sm:$0xff] 0.0
          %381 = vst [vmem:[#allocation2 + $0x18] sm:$0xff] 0.0
          %382 = vst [vmem:[#allocation2 + $0x20] sm:$0xff] 0.0
          %383 = vst [vmem:[#allocation2 + $0x28] sm:$0xff] 0.0
          %384 = vst [vmem:[#allocation2 + $0x30] sm:$0xff] 0.0
          %385 = vst [vmem:[#allocation2 + $0x38] sm:$0xff] 0.0
          %386 = vst [vmem:[#allocation2 + $0x40] sm:$0xff] 0.0
          %387 = vst [vmem:[#allocation2 + $0x48] sm:$0xff] 0.0
          %388 = vst [vmem:[#allocation2 + $0x50] sm:$0xff] 0.0
          %389 = vst [vmem:[#allocation2 + $0x58] sm:$0xff] 0.0
          %390 = vst [vmem:[#allocation2 + $0x60] sm:$0xff] 0.0
          %391 = vst [vmem:[#allocation2 + $0x68] sm:$0xff] 0.0
          %392 = vst [vmem:[#allocation2 + $0x70] sm:$0xff] 0.0
          %393 = vst [vmem:[#allocation2 + $0x78] sm:$0xff] 0.0
        $region64: #{tpu_custom_call.1} parent=43 // pred_fallthru
          _
        %v394 = vld [vmem:[%s314] sm:$0xff]
        %v395 = vld [vmem:[%s314 + $0x8] sm:$0xff]
        %v396 = vld [vmem:[%s314 + $0x10] sm:$0xff]
        %v397 = vld [vmem:[%s314 + $0x18] sm:$0xff]
        %v398 = vld [vmem:[%s314 + $0x20] sm:$0xff]
        %v399 = vld [vmem:[%s314 + $0x28] sm:$0xff]
        %v400 = vld [vmem:[%s314 + $0x30] sm:$0xff]
        %v401 = vld [vmem:[%s314 + $0x38] sm:$0xff]
        %v402 = vld [vmem:[%s314 + $0x40] sm:$0xff]
        %v403 = vld [vmem:[%s314 + $0x48] sm:$0xff]
        %v404 = vld [vmem:[%s314 + $0x50] sm:$0xff]
        %v405 = vld [vmem:[%s314 + $0x58] sm:$0xff]
        %v406 = vld [vmem:[%s314 + $0x60] sm:$0xff]
        %v407 = vld [vmem:[%s314 + $0x68] sm:$0xff]
        %v408 = vld [vmem:[%s314 + $0x70] sm:$0xff]
        %v409 = vld [vmem:[%s314 + $0x78] sm:$0xff]
        %v410 = vld [vmem:[#allocation2] sm:$0xff]
        %v411 = vld [vmem:[#allocation2 + $0x8] sm:$0xff]
        %v412 = vld [vmem:[#allocation2 + $0x10] sm:$0xff]
        %v413 = vld [vmem:[#allocation2 + $0x18] sm:$0xff]
        %v414 = vld [vmem:[#allocation2 + $0x20] sm:$0xff]
        %v415 = vld [vmem:[#allocation2 + $0x28] sm:$0xff]
        %v416 = vld [vmem:[#allocation2 + $0x30] sm:$0xff]
        %v417 = vld [vmem:[#allocation2 + $0x38] sm:$0xff]
        %v418 = vld [vmem:[#allocation2 + $0x40] sm:$0xff]
        %v419 = vld [vmem:[#allocation2 + $0x48] sm:$0xff]
        %v420 = vld [vmem:[#allocation2 + $0x50] sm:$0xff]
        %v421 = vld [vmem:[#allocation2 + $0x58] sm:$0xff]
        %v422 = vld [vmem:[#allocation2 + $0x60] sm:$0xff]
        %v423 = vld [vmem:[#allocation2 + $0x68] sm:$0xff]
        %v424 = vld [vmem:[#allocation2 + $0x70] sm:$0xff]
        %v425 = vld [vmem:[#allocation2 + $0x78] sm:$0xff]
        %v426 = vld [vmem:[#allocation6] sm:$0xf]
        %v427 = vld [vmem:[#allocation6 + $0x4] sm:$0xf]
        %v428 = vld [vmem:[#allocation6 + $0x8] sm:$0xf]
        %v429 = vld [vmem:[#allocation6 + $0xc] sm:$0xf]
        %v430 = vld [vmem:[#allocation6 + $0x10] sm:$0xf]
        %v431 = vld [vmem:[#allocation6 + $0x14] sm:$0xf]
        %v432 = vld [vmem:[#allocation6 + $0x18] sm:$0xf]
        %v433 = vld [vmem:[#allocation6 + $0x1c] sm:$0xf]
        %v434 = vld [vmem:[#allocation6 + $0x20] sm:$0xf]
        %v435 = vld [vmem:[#allocation6 + $0x24] sm:$0xf]
        %v436 = vld [vmem:[#allocation6 + $0x28] sm:$0xf]
        %v437 = vld [vmem:[#allocation6 + $0x2c] sm:$0xf]
        %v438 = vld [vmem:[#allocation6 + $0x30] sm:$0xf]
        %v439 = vld [vmem:[#allocation6 + $0x34] sm:$0xf]
        %v440 = vld [vmem:[#allocation6 + $0x38] sm:$0xf]
        %v441 = vld [vmem:[#allocation6 + $0x3c] sm:$0xf]
        %v442 = vld [vmem:[#allocation6 + $0x40] sm:$0xf]
        %v443 = vld [vmem:[#allocation6 + $0x44] sm:$0xf]
        %v444 = vld [vmem:[#allocation6 + $0x48] sm:$0xf]
        %v445 = vld [vmem:[#allocation6 + $0x4c] sm:$0xf]
        %v446 = vld [vmem:[#allocation6 + $0x50] sm:$0xf]
        %v447 = vld [vmem:[#allocation6 + $0x54] sm:$0xf]
        %v448 = vld [vmem:[#allocation6 + $0x58] sm:$0xf]
        %v449 = vld [vmem:[#allocation6 + $0x5c] sm:$0xf]
        %v450 = vld [vmem:[#allocation6 + $0x60] sm:$0xf]
        %v451 = vld [vmem:[#allocation6 + $0x64] sm:$0xf]
        %v452 = vld [vmem:[#allocation6 + $0x68] sm:$0xf]
        %v453 = vld [vmem:[#allocation6 + $0x6c] sm:$0xf]
        %v454 = vld [vmem:[#allocation6 + $0x70] sm:$0xf]
        %v455 = vld [vmem:[#allocation6 + $0x74] sm:$0xf]
        %v456 = vld [vmem:[#allocation6 + $0x78] sm:$0xf]
        %v457 = vld [vmem:[#allocation6 + $0x7c] sm:$0xf]
        %v474 = vunpack.c.l.b16 %v394
        %v475 = vunpack.c.h.b16 %v394
        %v476 = vunpack.c.l.b16 %v395
        %v477 = vunpack.c.h.b16 %v395
        %v478 = vunpack.c.l.b16 %v396
        %v479 = vunpack.c.h.b16 %v396
        %v480 = vunpack.c.l.b16 %v397
        %v481 = vunpack.c.h.b16 %v397
        %v482 = vunpack.c.l.b16 %v398
        %v483 = vunpack.c.h.b16 %v398
        %v484 = vunpack.c.l.b16 %v399
        %v485 = vunpack.c.h.b16 %v399
        %v486 = vunpack.c.l.b16 %v400
        %v487 = vunpack.c.h.b16 %v400
        %v488 = vunpack.c.l.b16 %v401
        %v489 = vunpack.c.h.b16 %v401
        %v490 = vunpack.c.l.b16 %v402
        %v491 = vunpack.c.h.b16 %v402
        %v492 = vunpack.c.l.b16 %v403
        %v493 = vunpack.c.h.b16 %v403
        %v494 = vunpack.c.l.b16 %v404
        %v495 = vunpack.c.h.b16 %v404
        %v496 = vunpack.c.l.b16 %v405
        %v497 = vunpack.c.h.b16 %v405
        %v498 = vunpack.c.l.b16 %v406
        %v499 = vunpack.c.h.b16 %v406
        %v500 = vunpack.c.l.b16 %v407
        %v501 = vunpack.c.h.b16 %v407
        %v502 = vunpack.c.l.b16 %v408
        %v503 = vunpack.c.h.b16 %v408
        %v504 = vunpack.c.l.b16 %v409
        %v505 = vunpack.c.h.b16 %v409
        %v506 = vpack.c.b16 %v476, %v474
        %v507 = vpack.c.b16 %v477, %v475
        %v508 = vpack.c.b16 %v480, %v478
        %v509 = vpack.c.b16 %v481, %v479
        %v510 = vpack.c.b16 %v484, %v482
        %v511 = vpack.c.b16 %v485, %v483
        %v512 = vpack.c.b16 %v488, %v486
        %v513 = vpack.c.b16 %v489, %v487
        %v514 = vpack.c.b16 %v492, %v490
        %v515 = vpack.c.b16 %v493, %v491
        %v516 = vpack.c.b16 %v496, %v494
        %v517 = vpack.c.b16 %v497, %v495
        %v518 = vpack.c.b16 %v500, %v498
        %v519 = vpack.c.b16 %v501, %v499
        %v520 = vpack.c.b16 %v504, %v502
        %v521 = vpack.c.b16 %v505, %v503
        %v570 = vunpack.c.l.b16 %v426
        %v571 = vunpack.c.l.b16 %v427
        %v572 = vunpack.c.l.b16 %v428
        %v573 = vunpack.c.l.b16 %v429
        %v574 = vunpack.c.l.b16 %v430
        %v575 = vunpack.c.l.b16 %v431
        %v576 = vunpack.c.l.b16 %v432
        %v577 = vunpack.c.l.b16 %v433
        %v578 = vunpack.c.l.b16 %v434
        %v579 = vunpack.c.l.b16 %v435
        %v580 = vunpack.c.l.b16 %v436
        %v581 = vunpack.c.l.b16 %v437
        %v582 = vunpack.c.l.b16 %v438
        %v583 = vunpack.c.l.b16 %v439
        %v584 = vunpack.c.l.b16 %v440
        %v585 = vunpack.c.l.b16 %v441
        %v586 = vunpack.c.l.b16 %v442
        %v587 = vunpack.c.l.b16 %v443
        %v588 = vunpack.c.l.b16 %v444
        %v589 = vunpack.c.l.b16 %v445
        %v590 = vunpack.c.l.b16 %v446
        %v591 = vunpack.c.l.b16 %v447
        %v592 = vunpack.c.l.b16 %v448
        %v593 = vunpack.c.l.b16 %v449
        %v594 = vunpack.c.l.b16 %v450
        %v595 = vunpack.c.l.b16 %v451
        %v596 = vunpack.c.l.b16 %v452
        %v597 = vunpack.c.l.b16 %v453
        %v598 = vunpack.c.l.b16 %v454
        %v599 = vunpack.c.l.b16 %v455
        %v600 = vunpack.c.l.b16 %v456
        %v601 = vunpack.c.l.b16 %v457
        %v602 = vpack.c.b16 %v571, %v570
        %v603 = vpack.c.b16 %v573, %v572
        %v604 = vpack.c.b16 %v575, %v574
        %v605 = vpack.c.b16 %v577, %v576
        %v606 = vpack.c.b16 %v579, %v578
        %v607 = vpack.c.b16 %v581, %v580
        %v608 = vpack.c.b16 %v583, %v582
        %v609 = vpack.c.b16 %v585, %v584
        %v610 = vpack.c.b16 %v587, %v586
        %v611 = vpack.c.b16 %v589, %v588
        %v612 = vpack.c.b16 %v591, %v590
        %v613 = vpack.c.b16 %v593, %v592
        %v614 = vpack.c.b16 %v595, %v594
        %v615 = vpack.c.b16 %v597, %v596
        %v616 = vpack.c.b16 %v599, %v598
        %v617 = vpack.c.b16 %v601, %v600
        %634 = vmatpush.bf16.msra.mxu0 %v609
        %635 = vmatpush.bf16.msra.mxu0 %v608
        %636 = vmatpush.bf16.msra.mxu0 %v607
        %637 = vmatpush.bf16.msra.mxu0 %v606
        %638 = vmatpush.bf16.msra.mxu0 %v605
        %639 = vmatpush.bf16.msra.mxu0 %v604
        %640 = vmatpush.bf16.msra.mxu0 %v603
        %641 = vmatpush.bf16.msra.mxu0 %v602
        %642 = vmatmul.bf16.gmra.mxu0 %v506
        %v643 = vpop.f32.mrf.mxu0
        %v644 = vadd.f32 0.0, %v643
        %v645 = vpop.f32.mrf.mxu0
        %v646 = vadd.f32 0.0, %v645
        %647 = vmatmul.bf16.gmra.mxu0 %v508
        %v648 = vpop.f32.mrf.mxu0
        %v649 = vadd.f32 0.0, %v648
        %v650 = vpop.f32.mrf.mxu0
        %v651 = vadd.f32 0.0, %v650
        %652 = vmatmul.bf16.gmra.mxu0 %v510
        %v653 = vpop.f32.mrf.mxu0
        %v654 = vadd.f32 0.0, %v653
        %v655 = vpop.f32.mrf.mxu0
        %v656 = vadd.f32 0.0, %v655
        %657 = vmatmul.bf16.gmra.mxu0 %v512
        %v658 = vpop.f32.mrf.mxu0
        %v659 = vadd.f32 0.0, %v658
        %v660 = vpop.f32.mrf.mxu0
        %v661 = vadd.f32 0.0, %v660
        %662 = vmatmul.bf16.gmra.mxu0 %v514
        %v663 = vpop.f32.mrf.mxu0
        %v664 = vadd.f32 0.0, %v663
        %v665 = vpop.f32.mrf.mxu0
        %v666 = vadd.f32 0.0, %v665
        %667 = vmatmul.bf16.gmra.mxu0 %v516
        %v668 = vpop.f32.mrf.mxu0
        %v669 = vadd.f32 0.0, %v668
        %v670 = vpop.f32.mrf.mxu0
        %v671 = vadd.f32 0.0, %v670
        %672 = vmatmul.bf16.gmra.mxu0 %v518
        %v673 = vpop.f32.mrf.mxu0
        %v674 = vadd.f32 0.0, %v673
        %v675 = vpop.f32.mrf.mxu0
        %v676 = vadd.f32 0.0, %v675
        %677 = vmatmul.bf16.gmra.mxu0 %v520
        %v678 = vpop.f32.mrf.mxu0
        %v679 = vadd.f32 0.0, %v678
        %v680 = vpop.f32.mrf.mxu0
        %v681 = vadd.f32 0.0, %v680
        %682 = vdwg.mxu0
        %683 = vmatpush.bf16.msra.mxu0 %v617
        %684 = vmatpush.bf16.msra.mxu0 %v616
        %685 = vmatpush.bf16.msra.mxu0 %v615
        %686 = vmatpush.bf16.msra.mxu0 %v614
        %687 = vmatpush.bf16.msra.mxu0 %v613
        %688 = vmatpush.bf16.msra.mxu0 %v612
        %689 = vmatpush.bf16.msra.mxu0 %v611
        %690 = vmatpush.bf16.msra.mxu0 %v610
        %691 = vmatmul.bf16.gmra.mxu0 %v507
        %v692 = vpop.f32.mrf.mxu0
        %v693 = vadd.f32 %v644, %v692
        %v694 = vpop.f32.mrf.mxu0
        %v695 = vadd.f32 %v646, %v694
        %696 = vmatmul.bf16.gmra.mxu0 %v509
        %v697 = vpop.f32.mrf.mxu0
        %v698 = vadd.f32 %v649, %v697
        %v699 = vpop.f32.mrf.mxu0
        %v700 = vadd.f32 %v651, %v699
        %701 = vmatmul.bf16.gmra.mxu0 %v511
        %v702 = vpop.f32.mrf.mxu0
        %v703 = vadd.f32 %v654, %v702
        %v704 = vpop.f32.mrf.mxu0
        %v705 = vadd.f32 %v656, %v704
        %706 = vmatmul.bf16.gmra.mxu0 %v513
        %v707 = vpop.f32.mrf.mxu0
        %v708 = vadd.f32 %v659, %v707
        %v709 = vpop.f32.mrf.mxu0
        %v710 = vadd.f32 %v661, %v709
        %711 = vmatmul.bf16.gmra.mxu0 %v515
        %v712 = vpop.f32.mrf.mxu0
        %v713 = vadd.f32 %v664, %v712
        %v714 = vpop.f32.mrf.mxu0
        %v715 = vadd.f32 %v666, %v714
        %716 = vmatmul.bf16.gmra.mxu0 %v517
        %v717 = vpop.f32.mrf.mxu0
        %v718 = vadd.f32 %v669, %v717
        %v719 = vpop.f32.mrf.mxu0
        %v720 = vadd.f32 %v671, %v719
        %721 = vmatmul.bf16.gmra.mxu0 %v519
        %v722 = vpop.f32.mrf.mxu0
        %v723 = vadd.f32 %v674, %v722
        %v724 = vpop.f32.mrf.mxu0
        %v725 = vadd.f32 %v676, %v724
        %726 = vmatmul.bf16.gmra.mxu0 %v521
        %v727 = vpop.f32.mrf.mxu0
        %v728 = vadd.f32 %v679, %v727
        %v729 = vpop.f32.mrf.mxu0
        %v730 = vadd.f32 %v681, %v729
        %731 = vdwg.mxu0
        %v732 = vadd.f32 %v410, %v693
        %v733 = vadd.f32 %v411, %v695
        %v734 = vadd.f32 %v412, %v698
        %v735 = vadd.f32 %v413, %v700
        %v736 = vadd.f32 %v414, %v703
        %v737 = vadd.f32 %v415, %v705
        %v738 = vadd.f32 %v416, %v708
        %v739 = vadd.f32 %v417, %v710
        %v740 = vadd.f32 %v418, %v713
        %v741 = vadd.f32 %v419, %v715
        %v742 = vadd.f32 %v420, %v718
        %v743 = vadd.f32 %v421, %v720
        %v744 = vadd.f32 %v422, %v723
        %v745 = vadd.f32 %v423, %v725
        %v746 = vadd.f32 %v424, %v728
        %v747 = vadd.f32 %v425, %v730
        %748 = vst [vmem:[#allocation2] sm:$0xff] %v732
        %749 = vst [vmem:[#allocation2 + $0x8] sm:$0xff] %v733
        %750 = vst [vmem:[#allocation2 + $0x10] sm:$0xff] %v734
        %751 = vst [vmem:[#allocation2 + $0x18] sm:$0xff] %v735
        %752 = vst [vmem:[#allocation2 + $0x20] sm:$0xff] %v736
        %753 = vst [vmem:[#allocation2 + $0x28] sm:$0xff] %v737
        %754 = vst [vmem:[#allocation2 + $0x30] sm:$0xff] %v738
        %755 = vst [vmem:[#allocation2 + $0x38] sm:$0xff] %v739
        %756 = vst [vmem:[#allocation2 + $0x40] sm:$0xff] %v740
        %757 = vst [vmem:[#allocation2 + $0x48] sm:$0xff] %v741
        %758 = vst [vmem:[#allocation2 + $0x50] sm:$0xff] %v742
        %759 = vst [vmem:[#allocation2 + $0x58] sm:$0xff] %v743
        %760 = vst [vmem:[#allocation2 + $0x60] sm:$0xff] %v744
        %761 = vst [vmem:[#allocation2 + $0x68] sm:$0xff] %v745
        %762 = vst [vmem:[#allocation2 + $0x70] sm:$0xff] %v746
        %763 = vst [vmem:[#allocation2 + $0x78] sm:$0xff] %v747
        // Predicated region
        $region65: #{tpu_custom_call.1} parent=43 // pred_check
          %p764 = pneg %p374
        $region66: #{tpu_custom_call.1} parent=43 // pred_check_branch
          %766 = sbr.rel (%p764) target = $region68
        $region67: #{tpu_custom_call.1} parent=43 // pred_region
          %v767 = vld [vmem:[#allocation2] sm:$0xff]
          %v768 = vld [vmem:[#allocation2 + $0x8] sm:$0xff]
          %v769 = vld [vmem:[#allocation2 + $0x10] sm:$0xff]
          %v770 = vld [vmem:[#allocation2 + $0x18] sm:$0xff]
          %v771 = vld [vmem:[#allocation2 + $0x20] sm:$0xff]
          %v772 = vld [vmem:[#allocation2 + $0x28] sm:$0xff]
          %v773 = vld [vmem:[#allocation2 + $0x30] sm:$0xff]
          %v774 = vld [vmem:[#allocation2 + $0x38] sm:$0xff]
          %v775 = vld [vmem:[#allocation2 + $0x40] sm:$0xff]
          %v776 = vld [vmem:[#allocation2 + $0x48] sm:$0xff]
          %v777 = vld [vmem:[#allocation2 + $0x50] sm:$0xff]
          %v778 = vld [vmem:[#allocation2 + $0x58] sm:$0xff]
          %v779 = vld [vmem:[#allocation2 + $0x60] sm:$0xff]
          %v780 = vld [vmem:[#allocation2 + $0x68] sm:$0xff]
          %v781 = vld [vmem:[#allocation2 + $0x70] sm:$0xff]
          %v782 = vld [vmem:[#allocation2 + $0x78] sm:$0xff]
          %v783 = vld [vmem:[%s329] sm:$0xf]
          %v784 = vld [vmem:[%s329 + $0x4] sm:$0xf]
          %v785 = vld [vmem:[%s329 + $0x8] sm:$0xf]
          %v786 = vld [vmem:[%s329 + $0xc] sm:$0xf]
          %v787 = vld [vmem:[%s329 + $0x10] sm:$0xf]
          %v788 = vld [vmem:[%s329 + $0x14] sm:$0xf]
          %v789 = vld [vmem:[%s329 + $0x18] sm:$0xf]
          %v790 = vld [vmem:[%s329 + $0x1c] sm:$0xf]
          %v791 = vld [vmem:[%s329 + $0x20] sm:$0xf]
          %v792 = vld [vmem:[%s329 + $0x24] sm:$0xf]
          %v793 = vld [vmem:[%s329 + $0x28] sm:$0xf]
          %v794 = vld [vmem:[%s329 + $0x2c] sm:$0xf]
          %v795 = vld [vmem:[%s329 + $0x30] sm:$0xf]
          %v796 = vld [vmem:[%s329 + $0x34] sm:$0xf]
          %v797 = vld [vmem:[%s329 + $0x38] sm:$0xf]
          %v798 = vld [vmem:[%s329 + $0x3c] sm:$0xf]
          %v799 = vunpack.c.l.bf16 %v783
          %v800 = vunpack.c.l.bf16 %v784
          %v801 = vunpack.c.l.bf16 %v785
          %v802 = vunpack.c.l.bf16 %v786
          %v803 = vunpack.c.l.bf16 %v787
          %v804 = vunpack.c.l.bf16 %v788
          %v805 = vunpack.c.l.bf16 %v789
          %v806 = vunpack.c.l.bf16 %v790
          %v807 = vunpack.c.l.bf16 %v791
          %v808 = vunpack.c.l.bf16 %v792
          %v809 = vunpack.c.l.bf16 %v793
          %v810 = vunpack.c.l.bf16 %v794
          %v811 = vunpack.c.l.bf16 %v795
          %v812 = vunpack.c.l.bf16 %v796
          %v813 = vunpack.c.l.bf16 %v797
          %v814 = vunpack.c.l.bf16 %v798
          %v815 = vadd.f32 %v767, %v799
          %v816 = vadd.f32 %v768, %v800
          %v817 = vadd.f32 %v769, %v801
          %v818 = vadd.f32 %v770, %v802
          %v819 = vadd.f32 %v771, %v803
          %v820 = vadd.f32 %v772, %v804
          %v821 = vadd.f32 %v773, %v805
          %v822 = vadd.f32 %v774, %v806
          %v823 = vadd.f32 %v775, %v807
          %v824 = vadd.f32 %v776, %v808
          %v825 = vadd.f32 %v777, %v809
          %v826 = vadd.f32 %v778, %v810
          %v827 = vadd.f32 %v779, %v811
          %v828 = vadd.f32 %v780, %v812
          %v829 = vadd.f32 %v781, %v813
          %v830 = vadd.f32 %v782, %v814
          %v831 = vld [vmem:[%s3] sm:$0x1]
          %v833 = vperm.slane %v831, 0
          %v835 = vadd.f32 %v815, %v833
          %v836 = vadd.f32 %v816, %v833
          %v837 = vadd.f32 %v817, %v833
          %v838 = vadd.f32 %v818, %v833
          %v839 = vadd.f32 %v819, %v833
          %v840 = vadd.f32 %v820, %v833
          %v841 = vadd.f32 %v821, %v833
          %v842 = vadd.f32 %v822, %v833
          %v843 = vadd.f32 %v823, %v833
          %v844 = vadd.f32 %v824, %v833
          %v845 = vadd.f32 %v825, %v833
          %v846 = vadd.f32 %v826, %v833
          %v847 = vadd.f32 %v827, %v833
          %v848 = vadd.f32 %v828, %v833
          %v849 = vadd.f32 %v829, %v833
          %v850 = vadd.f32 %v830, %v833
          %v851 = vmax.f32 %v835, 0.0
          %v852 = vmax.f32 %v836, 0.0
          %v853 = vmax.f32 %v837, 0.0
          %v854 = vmax.f32 %v838, 0.0
          %v855 = vmax.f32 %v839, 0.0
          %v856 = vmax.f32 %v840, 0.0
          %v857 = vmax.f32 %v841, 0.0
          %v858 = vmax.f32 %v842, 0.0
          %v859 = vmax.f32 %v843, 0.0
          %v860 = vmax.f32 %v844, 0.0
          %v861 = vmax.f32 %v845, 0.0
          %v862 = vmax.f32 %v846, 0.0
          %v863 = vmax.f32 %v847, 0.0
          %v864 = vmax.f32 %v848, 0.0
          %v865 = vmax.f32 %v849, 0.0
          %v866 = vmax.f32 %v850, 0.0
          %v867 = vpack.c.bf16 %v852, %v851
          %v868 = vpack.c.bf16 %v854, %v853
          %v869 = vpack.c.bf16 %v856, %v855
          %v870 = vpack.c.bf16 %v858, %v857
          %v871 = vpack.c.bf16 %v860, %v859
          %v872 = vpack.c.bf16 %v862, %v861
          %v873 = vpack.c.bf16 %v864, %v863
          %v874 = vpack.c.bf16 %v866, %v865
          %v875 = vld [vmem:[#allocation9] sm:$0xf]
          %v876 = vld [vmem:[#allocation9 + $0x4] sm:$0xf]
          %v877 = vld [vmem:[#allocation9 + $0x8] sm:$0xf]
          %v878 = vld [vmem:[#allocation9 + $0xc] sm:$0xf]
          %v879 = vld [vmem:[#allocation9 + $0x10] sm:$0xf]
          %v880 = vld [vmem:[#allocation9 + $0x14] sm:$0xf]
          %v881 = vld [vmem:[#allocation9 + $0x18] sm:$0xf]
          %v882 = vld [vmem:[#allocation9 + $0x1c] sm:$0xf]
          %v883 = vld [vmem:[#allocation9 + $0x20] sm:$0xf]
          %v884 = vld [vmem:[#allocation9 + $0x24] sm:$0xf]
          %v885 = vld [vmem:[#allocation9 + $0x28] sm:$0xf]
          %v886 = vld [vmem:[#allocation9 + $0x2c] sm:$0xf]
          %v887 = vld [vmem:[#allocation9 + $0x30] sm:$0xf]
          %v888 = vld [vmem:[#allocation9 + $0x34] sm:$0xf]
          %v889 = vld [vmem:[#allocation9 + $0x38] sm:$0xf]
          %v890 = vld [vmem:[#allocation9 + $0x3c] sm:$0xf]
          %v891 = vld [vmem:[%s5] sm:$0x1]
          %v893 = vperm.slane %v891, 0
          %v911 = vunpack.c.l.b16 %v875
          %v912 = vunpack.c.l.b16 %v876
          %v913 = vunpack.c.l.b16 %v877
          %v914 = vunpack.c.l.b16 %v878
          %v915 = vunpack.c.l.b16 %v879
          %v916 = vunpack.c.l.b16 %v880
          %v917 = vunpack.c.l.b16 %v881
          %v918 = vunpack.c.l.b16 %v882
          %v919 = vunpack.c.l.b16 %v883
          %v920 = vunpack.c.l.b16 %v884
          %v921 = vunpack.c.l.b16 %v885
          %v922 = vunpack.c.l.b16 %v886
          %v923 = vunpack.c.l.b16 %v887
          %v924 = vunpack.c.l.b16 %v888
          %v925 = vunpack.c.l.b16 %v889
          %v926 = vunpack.c.l.b16 %v890
          %v927 = vpack.c.b16 %v912, %v911
          %v928 = vpack.c.b16 %v914, %v913
          %v929 = vpack.c.b16 %v916, %v915
          %v930 = vpack.c.b16 %v918, %v917
          %v931 = vpack.c.b16 %v920, %v919
          %v932 = vpack.c.b16 %v922, %v921
          %v933 = vpack.c.b16 %v924, %v923
          %v934 = vpack.c.b16 %v926, %v925
          %943 = vmatpush.bf16.msra.mxu0 %v934
          %944 = vmatpush.bf16.msra.mxu0 %v933
          %945 = vmatpush.bf16.msra.mxu0 %v932
          %946 = vmatpush.bf16.msra.mxu0 %v931
          %947 = vmatpush.bf16.msra.mxu0 %v930
          %948 = vmatpush.bf16.msra.mxu0 %v929
          %949 = vmatpush.bf16.msra.mxu0 %v928
          %950 = vmatpush.bf16.msra.mxu0 %v927
          %951 = vmatmul.bf16.gmra.mxu0 %v867
          %v952 = vpop.f32.mrf.mxu0
          %v953 = vadd.f32 %v893, %v952
          %v954 = vpop.f32.mrf.mxu0
          %v955 = vadd.f32 %v893, %v954
          %956 = vmatmul.bf16.gmra.mxu0 %v868
          %v957 = vpop.f32.mrf.mxu0
          %v958 = vadd.f32 %v893, %v957
          %v959 = vpop.f32.mrf.mxu0
          %v960 = vadd.f32 %v893, %v959
          %961 = vmatmul.bf16.gmra.mxu0 %v869
          %v962 = vpop.f32.mrf.mxu0
          %v963 = vadd.f32 %v893, %v962
          %v964 = vpop.f32.mrf.mxu0
          %v965 = vadd.f32 %v893, %v964
          %966 = vmatmul.bf16.gmra.mxu0 %v870
          %v967 = vpop.f32.mrf.mxu0
          %v968 = vadd.f32 %v893, %v967
          %v969 = vpop.f32.mrf.mxu0
          %v970 = vadd.f32 %v893, %v969
          %971 = vmatmul.bf16.gmra.mxu0 %v871
          %v972 = vpop.f32.mrf.mxu0
          %v973 = vadd.f32 %v893, %v972
          %v974 = vpop.f32.mrf.mxu0
          %v975 = vadd.f32 %v893, %v974
          %976 = vmatmul.bf16.gmra.mxu0 %v872
          %v977 = vpop.f32.mrf.mxu0
          %v978 = vadd.f32 %v893, %v977
          %v979 = vpop.f32.mrf.mxu0
          %v980 = vadd.f32 %v893, %v979
          %981 = vmatmul.bf16.gmra.mxu0 %v873
          %v982 = vpop.f32.mrf.mxu0
          %v983 = vadd.f32 %v893, %v982
          %v984 = vpop.f32.mrf.mxu0
          %v985 = vadd.f32 %v893, %v984
          %986 = vmatmul.bf16.gmra.mxu0 %v874
          %v987 = vpop.f32.mrf.mxu0
          %v988 = vadd.f32 %v893, %v987
          %v989 = vpop.f32.mrf.mxu0
          %v990 = vadd.f32 %v893, %v989
          %991 = vdwg.mxu0
          %992 = vst [vmem:[%s368] sm:$0xff] %v953
          %993 = vst [vmem:[%s368 + $0x8] sm:$0xff] %v955
          %994 = vst [vmem:[%s368 + $0x10] sm:$0xff] %v958
          %995 = vst [vmem:[%s368 + $0x18] sm:$0xff] %v960
          %996 = vst [vmem:[%s368 + $0x20] sm:$0xff] %v963
          %997 = vst [vmem:[%s368 + $0x28] sm:$0xff] %v965
          %998 = vst [vmem:[%s368 + $0x30] sm:$0xff] %v968
          %999 = vst [vmem:[%s368 + $0x38] sm:$0xff] %v970
          %1000 = vst [vmem:[%s368 + $0x40] sm:$0xff] %v973
          %1001 = vst [vmem:[%s368 + $0x48] sm:$0xff] %v975
          %1002 = vst [vmem:[%s368 + $0x50] sm:$0xff] %v978
          %1003 = vst [vmem:[%s368 + $0x58] sm:$0xff] %v980
          %1004 = vst [vmem:[%s368 + $0x60] sm:$0xff] %v983
          %1005 = vst [vmem:[%s368 + $0x68] sm:$0xff] %v985
          %1006 = vst [vmem:[%s368 + $0x70] sm:$0xff] %v988
          %1007 = vst [vmem:[%s368 + $0x78] sm:$0xff] %v990
        $region68: #{tpu_custom_call.1} parent=43 // pred_fallthru
          _
        %s1008 = sand.u32 %s187, 1
        %s1009 = scalar_lea.sflag [#allocation5], %s1008
        %s1010 = sand.u32 %s187, 1
        %s1011 = smul.addr %s1010, 128
        %s1012 = scalar_lea.vmem [#allocation10], %s1011
        // Predicated region
        $region69: #{tpu_custom_call.1} parent=43 // pred_check
          %p1013 = pneg %p197
        $region70: #{tpu_custom_call.1} parent=43 // pred_check_branch
          %1015 = sbr.rel (%p1013) target = $region72
        $region71: #{tpu_custom_call.1} parent=43 // pred_region
          %s1016 = smul.u32 16, %s28
          %1018 = vsyncadd %s1009, 0
          %s1019 = smul.addr %s1016, 8
          %s1020 = scalar_lea.hbm %s6, %s1019
          %s1021 = sshll.u32 %s1012, 4
          %s1022 = int_to_ptr.vmem [resolvable:$true] %s1021
          %s1023 = sshll.u32 %s1020, 4
          %s1024 = int_to_ptr.hbm [resolvable:$true] %s1023
          %1029 = dma.vmem_to_hbm [thread:$0]  %s1022, 2048, %s1024, %s1009, 128, 128, 8
        $region72: #{tpu_custom_call.1} parent=43 // pred_fallthru
          _
      $region44: #{tpu_custom_call.1} parent=5 // pred_fallthru
        _
      %p1030 = scmp.le.s32.totalorder 2, %s19
      // Predicated region
      $region73: #{tpu_custom_call.1} parent=5 // pred_check
        %p1031 = pneg %p1030
      $region74: #{tpu_custom_call.1} parent=5 // pred_check_branch
        %1033 = sbr.rel (%p1031) target = $region76
      $region75: #{tpu_custom_call.1} parent=5 // pred_region
        %s1034 = ssub.s32 %s19, 2
        // Predicated region
        $region77: #{tpu_custom_call.1} parent=75 // pred_check
          %p1035 = pneg %p203
        $region78: #{tpu_custom_call.1} parent=75 // pred_check_branch
          %1037 = sbr.rel (%p1035) target = $region80
        $region79: #{tpu_custom_call.1} parent=75 // pred_region
          %s1038 = sand.u32 %s188, 1
          %s1039 = scalar_lea.sflag [#allocation5], %s1038
          %s1040 = sand.u32 %s188, 1
          %s1041 = smul.addr %s1040, 128
          %s1042 = scalar_lea.vmem [#allocation10], %s1041
          %1044 = dma.done %s1039, 2048
        $region80: #{tpu_custom_call.1} parent=75 // pred_fallthru
          _
      $region76: #{tpu_custom_call.1} parent=5 // pred_fallthru
        _
    $region6: #{tpu_custom_call.1} parent=1 // loop_footer
      %s23 = sadd.s32 1, %s19
    $region7: #{tpu_custom_call.1} parent=1 // loop_footer_branch
      %18 = sbr.rel target = $region3
    $region8: #{tpu_custom_call.1} parent=1 // loop_exit
      _
    %1045 = vsyncpa [#allocation4], 1
    %s1046 = scalar_lea.sflag [#allocation4], 1
    %1047 = vsyncpa %s1046, 1
    %1048 = vsyncpa [#allocation7], 1
    %1049 = vsyncpa [#allocation5], 1
    %s1050 = scalar_lea.sflag [#allocation5], 1
    %1051 = vsyncpa %s1050, 1

</llo_original>
